<compile_context>
chip_gen: v6e
topology: v6e:2x2x1
jax: 0.10.0
libtpu: 0.0.40
codegen_flags: <defaults>
</compile_context>

<pallas_src>
import math
from functools import partial

import jax
import jax.numpy as jnp
from jax.experimental import pallas as pl
from jax.experimental.pallas import tpu as pltpu

EPS = 1e-5
_LANE = 128


def _round_up(x, m):
    return ((x + m - 1) // m) * m


def _vmem_limit_bytes():
    """Per-generation scoped-VMEM limit (v7x has 64 MiB physical vs 128 MiB)."""
    try:
        cap = int(pltpu.get_tpu_info().vmem_capacity_bytes)
    except Exception:
        cap = 64 << 20                      # conservative (v7x-sized) fallback
    return max(32 << 20, min(cap // 2, 64 << 20))


def _num_tensorcores():
    """Heuristic: v7x exposes 2 TensorCores per chip (megacore-style sharding)."""
    try:
        kind = jax.devices()[0].device_kind.lower()
        if "v7" in kind or "7x" in kind:
            return 2
    except Exception:
        pass
    return 1


def _pick_tile_m(m, kdim, n, *, in_bytes, out_bytes, vmem_budget, even_steps):
    """Largest M tile (multiple of 16, <= 1024, <= round_up(M, 16)) whose
    double-buffered working set fits the per-generation VMEM budget.

    Resident weight/bias blocks are counted twice: Pallas double-buffers every
    input BlockSpec even with a constant index_map.
    """
    cap = min(1024, _round_up(m, 16))
    resident = 2 * (kdim * n * in_bytes + n * 4)
    tm = cap
    while tm > 16:
        need = resident + 2 * tm * kdim * in_bytes + 2 * tm * n * out_bytes
        if need <= vmem_budget:
            break
        tm = max(16, _round_up(tm // 2, 16))
    tm = max(16, min(tm, cap))

    if even_steps:
        steps = pl.cdiv(m, tm)
        if steps > 1 and steps % 2 == 1:
            # Shrink the tile slightly so both TensorCores get equal step counts.
            for s in range(steps + 1, steps + 9, 2):
                t = max(16, _round_up(pl.cdiv(m, s), 16))
                if pl.cdiv(m, t) % 2 == 0:
                    tm = t
                    break
    return tm


def _embed_kernel(p_ref, w_ref, b_ref, o_ref):
    # Pure MXU GEMM (bf16 operands, f32 accumulation) + folded BN/bias + cast.
    acc = jnp.dot(p_ref[...], w_ref[...], preferred_element_type=jnp.float32)
    o_ref[...] = (acc + b_ref[...]).astype(o_ref.dtype)


@partial(jax.jit, static_argnames=("patch_size", "stride", "out_dtype"))
def _overlap_patch_embed_2d(x, weight, bias, gamma, beta, running_mean, running_var,
                            *, patch_size, stride, out_dtype):
    B, C, H, W = x.shape
    d_embed = weight.shape[0]
    K = patch_size
    pad = K // 2
    H_out = (H + 2 * pad - K) // stride + 1
    W_out = (W + 2 * pad - K) // stride + 1
    M = B * H_out * W_out
    Kdim = K * K * C

    compute_dtype = jnp.bfloat16
    out_dtype = jnp.dtype(out_dtype)

    # Contraction-dim alignment only when the extra read bytes are cheap (<=12.5%).
    kdim_aligned = _round_up(Kdim, _LANE)
    K_pad = kdim_aligned if (kdim_aligned - Kdim) * 8 <= Kdim else Kdim

    # ---- NHWC im2col, columns directly in their final (kh, kw, c) order, bf16.
    # Built lazily inside this jit: with allow_input_fusion the producer fusion
    # feeds the pallas input DMA instead of materializing (M, Kdim) in HBM.
    x_nhwc = jnp.transpose(x, (0, 2, 3, 1)).astype(compute_dtype)
    xp = jnp.pad(x_nhwc, ((0, 0), (pad, pad), (pad, pad), (0, 0)))
    taps = [xp[:, kh:kh + stride * H_out:stride, kw:kw + stride * W_out:stride, :]
            for kh in range(K) for kw in range(K)]            # each (B, H_out, W_out, C)
    if K_pad != Kdim:
        taps.append(jnp.zeros((B, H_out, W_out, K_pad - Kdim), compute_dtype))
    patches = jnp.concatenate(taps, axis=-1).reshape(M, K_pad)

    # ---- fold BN (eval, running stats) + conv bias into the GEMM -------------
    scale = gamma * jax.lax.rsqrt(running_var + EPS)           # (d_embed,)
    w2d = weight.transpose(2, 3, 1, 0).reshape(Kdim, d_embed)  # rows in (kh, kw, c) order
    w_folded = (w2d * scale[None, :]).astype(compute_dtype)
    if K_pad != Kdim:
        w_folded = jnp.pad(w_folded, ((0, K_pad - Kdim), (0, 0)))
    b_folded = ((bias - running_mean) * scale + beta).astype(jnp.float32)

    # ---- output columns: lane-pad only when d_embed >= 128 -------------------
    N_out = _round_up(d_embed, _LANE) if d_embed >= _LANE else d_embed
    if N_out != d_embed:
        w_folded = jnp.pad(w_folded, ((0, 0), (0, N_out - d_embed)))
        b_row = jnp.pad(b_folded, (0, N_out - d_embed)).reshape(1, N_out)
    else:
        b_row = b_folded.reshape(1, N_out)

    # ---- tiling: ragged M grid (no M padding), per-generation VMEM budget ----
    vmem_limit = _vmem_limit_bytes()
    tm = _pick_tile_m(M, K_pad, N_out,
                      in_bytes=2, out_bytes=out_dtype.itemsize,
                      vmem_budget=int(vmem_limit * 3 // 4),
                      even_steps=_num_tensorcores() >= 2)
    grid_m = pl.cdiv(M, tm)   # last (partial) tile is masked by Pallas

    out2d = pl.pallas_call(
        _embed_kernel,
        out_shape=jax.ShapeDtypeStruct((M, N_out), out_dtype),
        grid_spec=pltpu.PrefetchScalarGridSpec(
            num_scalar_prefetch=0,
            grid=(grid_m,),
            in_specs=[
                pl.BlockSpec((tm, K_pad), lambda i: (i, 0)),      # patch rows (tiled over M)
                pl.BlockSpec((K_pad, N_out), lambda i: (0, 0)),   # folded weights (resident)
                pl.BlockSpec((1, N_out), lambda i: (0, 0)),       # folded bias (resident)
            ],
            out_specs=pl.BlockSpec((tm, N_out), lambda i: (i, 0)),
        ),
        compiler_params=pltpu.CompilerParams(
            dimension_semantics=("parallel",),
            vmem_limit_bytes=vmem_limit,
            allow_input_fusion=[True, False, False],
        ),
    )(patches, w_folded, b_row)

    if N_out != d_embed:
        out2d = out2d[:, :d_embed]
    return out2d.reshape(B, H_out * W_out, d_embed)


def overlap_patch_embed(x, weight, bias, gamma, beta, running_mean, running_var,
                        *, patch_size, stride, out_dtype=None):
    """x: (B, C, H, W); weight: (d_embed, C, K, K); 1-D BN params of size d_embed.

    Returns (out, H_out, W_out) with out of shape (B, H_out*W_out, d_embed).
    `out_dtype` defaults to x.dtype; pass jnp.bfloat16 to halve output writeback
    when the downstream consumer accepts it (f32 accumulation is kept either way).
    """
    B, C, H, W = x.shape
    pad = patch_size // 2
    H_out = (H + 2 * pad - patch_size) // stride + 1
    W_out = (W + 2 * pad - patch_size) // stride + 1
    res_dtype = jnp.dtype(out_dtype) if out_dtype is not None else jnp.dtype(x.dtype)
    out = _overlap_patch_embed_2d(
        x, weight, bias, gamma, beta, running_mean, running_var,
        patch_size=patch_size, stride=stride, out_dtype=res_dtype)
    return out, H_out, W_out


if __name__ == "__main__":
    patch_size, stride = 3, 2
    B, C, H, W = 2, 4, 16, 16
    d_embed = 32

    key = jax.random.PRNGKey(0)
    ks = jax.random.split(key, 7)
    fan_in = C * patch_size * patch_size
    bound = 1.0 / math.sqrt(fan_in)
    # Deterministic synthetic parameters (shapes match the PyTorch module's __init__).
    weight = jax.random.uniform(ks[0], (d_embed, C, patch_size, patch_size),
                                jnp.float32, -bound, bound)
    bias = jax.random.uniform(ks[1], (d_embed,), jnp.float32, -bound, bound)
    gamma = jax.random.uniform(ks[2], (d_embed,), jnp.float32, 0.5, 1.5)
    beta = jax.random.uniform(ks[3], (d_embed,), jnp.float32, -0.5, 0.5)
    running_mean = jax.random.uniform(ks[4], (d_embed,), jnp.float32, -0.5, 0.5)
    running_var = jax.random.uniform(ks[5], (d_embed,), jnp.float32, 0.5, 1.5)
    x = jax.random.normal(ks[6], (B, C, H, W), jnp.float32)

    out, H_out, W_out = overlap_patch_embed(
        x, weight, bias, gamma, beta, running_mean, running_var,
        patch_size=patch_size, stride=stride)
    out = jax.block_until_ready(out)

    # Pure-JAX f32 reference (conv + BN eval + flatten/permute) for a sanity check.
    conv = jax.lax.conv_general_dilated(
        x, weight, window_strides=(stride, stride),
        padding=[(patch_size // 2, patch_size // 2)] * 2,
        dimension_numbers=("NCHW", "OIHW", "NCHW"))
    conv = conv + bias[None, :, None, None]
    ref = ((conv - running_mean[None, :, None, None])
           * jax.lax.rsqrt(running_var + EPS)[None, :, None, None]
           * gamma[None, :, None, None] + beta[None, :, None, None])
    ref = ref.reshape(B, d_embed, -1).transpose(0, 2, 1)

    assert out.shape == (B, H_out * W_out, d_embed)
    # bf16 operands with f32 accumulation: loosened tolerance vs the f32 reference.
    assert jnp.allclose(out, ref, atol=3e-2, rtol=3e-2)
    print("KERNEL_OK")
</pallas_src>

<mosaic_0001>
module attributes {stable_mosaic.version = 11 : i64} {
  func.func @_embed_kernel(%arg0: i32, %arg1: memref<128x36xbf16, #tpu.memory_space<vmem>>, %arg2: memref<36x32xbf16, #tpu.memory_space<vmem>>, %arg3: memref<1x32xf32, #tpu.memory_space<vmem>>, %arg4: memref<128x32xf32, #tpu.memory_space<vmem>>) attributes {dimension_semantics = [#tpu.dimension_semantics<parallel>], iteration_bounds = array<i64: 1>, scalar_prefetch = 0 : i64, scratch_operands = 0 : i64, tpu.core_type = #tpu.core_type<tc>, window_params = [{transform_indices = @transform_0, window_bounds = array<i64: 128, 36>}, {pipeline_mode = #tpu.pipeline_mode<synchronous>, transform_indices = @transform_1, window_bounds = array<i64: 36, 32>}, {pipeline_mode = #tpu.pipeline_mode<synchronous>, transform_indices = @transform_2, window_bounds = array<i64: 1, 32>}, {transform_indices = @transform_3, window_bounds = array<i64: 128, 32>}]} {
    %c0 = arith.constant 0 : index
    %c0_0 = arith.constant 0 : index
    %0 = vector.load %arg1[%c0, %c0_0] : memref<128x36xbf16, #tpu.memory_space<vmem>>, vector<128x36xbf16>
    %c0_1 = arith.constant 0 : index
    %c0_2 = arith.constant 0 : index
    %1 = vector.load %arg2[%c0_1, %c0_2] : memref<36x32xbf16, #tpu.memory_space<vmem>>, vector<36x32xbf16>
    %cst = arith.constant dense<0.000000e+00> : vector<128x32xf32>
    %2 = tpu.matmul %0, %1, %cst {dimension_numbers = #tpu.dot_dimension_numbers<[1], [0], [0], [1], [0, 0, 1, 1], [], []>} : vector<128x36xbf16>, vector<36x32xbf16>, vector<128x32xf32> -> vector<128x32xf32>
    %c0_3 = arith.constant 0 : index
    %c0_4 = arith.constant 0 : index
    %3 = vector.load %arg3[%c0_3, %c0_4] : memref<1x32xf32, #tpu.memory_space<vmem>>, vector<1x32xf32>
    %4 = vector.broadcast %3 : vector<1x32xf32> to vector<128x32xf32>
    %5 = arith.addf %2, %4 : vector<128x32xf32>
    %c0_5 = arith.constant 0 : index
    %c0_6 = arith.constant 0 : index
    %6 = vector.load %arg4[%c0_5, %c0_6] : memref<128x32xf32, #tpu.memory_space<vmem>>, vector<128x32xf32>
    tpu.vector_store %arg4[%c0_5, %c0_6], %5 {strides = array<i32>} : memref<128x32xf32, #tpu.memory_space<vmem>>, vector<128x32xf32>,
    return
  }
  func.func @transform_0(%arg0: i32) -> (i32, i32) {
    %c0_i32 = arith.constant 0 : i32
    %c0_i32_0 = arith.constant 0 : i32
    return %arg0, %c0_i32 : i32, i32
  }
  func.func @transform_1(%arg0: i32) -> (i32, i32) {
    %c0_i32 = arith.constant 0 : i32
    %c0_i32_0 = arith.constant 0 : i32
    %c0_i32_1 = arith.constant 0 : i32
    return %c0_i32, %c0_i32_0 : i32, i32
  }
  func.func @transform_2(%arg0: i32) -> (i32, i32) {
    %c0_i32 = arith.constant 0 : i32
    %c0_i32_0 = arith.constant 0 : i32
    %c0_i32_1 = arith.constant 0 : i32
    return %c0_i32, %c0_i32_0 : i32, i32
  }
  func.func @transform_3(%arg0: i32) -> (i32, i32) {
    %c0_i32 = arith.constant 0 : i32
    %c0_i32_0 = arith.constant 0 : i32
    return %arg0, %c0_i32 : i32, i32
  }
}

</mosaic_0001>

<llo_original>
// kernel: _overlap_patch_embed_2d.1
$region0: #{_overlap_patch_embed_2d.1}
  #allocation0 [shape = 'u32[]', space=smem, size = 0x4, offset = 0x4, fixed_abs, tag = 'smem constant byte address 0x4 - core index']
  #allocation1 [shape = 'u32[144,128]{1,0:T(1,128)}', space=vmem, size = 0x12000, scoped, tag = 'internal scratch']
  %s0 = inlined_call_operand.vmem [shape: bf16[128,36], index: 0, kind: input, shape index: {}]
  %s1 = inlined_call_operand.vmem [shape: bf16[36,32], index: 1, kind: input, shape index: {}]
  %s2 = inlined_call_operand.vmem [shape: f32[1,32], index: 2, kind: input, shape index: {}]
  %s3 = inlined_call_operand.vmem [shape: f32[128,32], index: 3, kind: output, shape index: {}]
  %s4 = sld [smem:[#allocation0]]
  $region22: #{_overlap_patch_embed_2d.1} parent=0
    _
  %s6 = ssub.s32 1, %s4
  %s7 = scalar_select 0, %s6, %s4
  // Predicated region
  $region2: #{_overlap_patch_embed_2d.1} parent=0 // pred_check
    _
  $region3: #{_overlap_patch_embed_2d.1} parent=0 // pred_check_branch
    %9 = sbr.rel (0) target = $region5
  $region4: #{_overlap_patch_embed_2d.1} parent=0 // pred_region
    _
  $region5: #{_overlap_patch_embed_2d.1} parent=0 // pred_fallthru
    _
  // Predicated region
  $region6: #{_overlap_patch_embed_2d.1} parent=0 // pred_check
    _
  $region7: #{_overlap_patch_embed_2d.1} parent=0 // pred_check_branch
    %11 = sbr.rel (0) target = $region9
  $region8: #{_overlap_patch_embed_2d.1} parent=0 // pred_region
    _
  $region9: #{_overlap_patch_embed_2d.1} parent=0 // pred_fallthru
    _
  // Predicated region
  $region10: #{_overlap_patch_embed_2d.1} parent=0 // pred_check
    _
  $region11: #{_overlap_patch_embed_2d.1} parent=0 // pred_check_branch
    %13 = sbr.rel (0) target = $region13
  $region12: #{_overlap_patch_embed_2d.1} parent=0 // pred_region
    _
  $region13: #{_overlap_patch_embed_2d.1} parent=0 // pred_fallthru
    _
  %v15 = vld [vmem:[%s0] sm:$0xf]
  %v16 = vld [vmem:[%s0 + $0x4] sm:$0xf]
  %v17 = vld [vmem:[%s0 + $0x8] sm:$0xf]
  %v18 = vld [vmem:[%s0 + $0xc] sm:$0xf]
  %v19 = vld [vmem:[%s0 + $0x10] sm:$0xf]
  %v20 = vld [vmem:[%s0 + $0x14] sm:$0xf]
  %v21 = vld [vmem:[%s0 + $0x18] sm:$0xf]
  %v22 = vld [vmem:[%s0 + $0x1c] sm:$0xf]
  %v23 = vld [vmem:[%s0 + $0x20] sm:$0xf]
  %v24 = vld [vmem:[%s0 + $0x24] sm:$0xf]
  %v25 = vld [vmem:[%s0 + $0x28] sm:$0xf]
  %v26 = vld [vmem:[%s0 + $0x2c] sm:$0xf]
  %v27 = vld [vmem:[%s0 + $0x30] sm:$0xf]
  %v28 = vld [vmem:[%s0 + $0x34] sm:$0xf]
  %v29 = vld [vmem:[%s0 + $0x38] sm:$0xf]
  %v30 = vld [vmem:[%s0 + $0x3c] sm:$0xf]
  %v31 = vld [vmem:[%s1] sm:$0xf]
  %v32 = vld [vmem:[%s1 + $0x4] sm:$0xf]
  %v33 = vld [vmem:[%s1 + $0x8] sm:$0xf]
  %v34 = vld [vmem:[%s1 + $0xc] sm:$0xf]
  %v35 = vld [vmem:[%s1 + $0x10] sm:$0x3]
  %v36 = vld [vmem:[%s2] sm:$0x1]
  %v38 = vlaneseq
  %v39 = vshrl.u32 %v38, 7
  %v40 = vsub.s32 0, %v39
  %v41 = vrot.slane %v36, %v40
  %v59 = vunpack.c.l.b16 %v15
  %v60 = vunpack.c.l.b16 %v16
  %v61 = vunpack.c.l.b16 %v17
  %v62 = vunpack.c.l.b16 %v18
  %v63 = vunpack.c.l.b16 %v19
  %v64 = vunpack.c.l.b16 %v20
  %v65 = vunpack.c.l.b16 %v21
  %v66 = vunpack.c.l.b16 %v22
  %v67 = vunpack.c.l.b16 %v23
  %v68 = vunpack.c.l.b16 %v24
  %v69 = vunpack.c.l.b16 %v25
  %v70 = vunpack.c.l.b16 %v26
  %v71 = vunpack.c.l.b16 %v27
  %v72 = vunpack.c.l.b16 %v28
  %v73 = vunpack.c.l.b16 %v29
  %v74 = vunpack.c.l.b16 %v30
  %v75 = vpack.c.b16 %v60, %v59
  %v76 = vpack.c.b16 %v62, %v61
  %v77 = vpack.c.b16 %v64, %v63
  %v78 = vpack.c.b16 %v66, %v65
  %v79 = vpack.c.b16 %v68, %v67
  %v80 = vpack.c.b16 %v70, %v69
  %v81 = vpack.c.b16 %v72, %v71
  %v82 = vpack.c.b16 %v74, %v73
  %v88 = vunpack.c.l.b16 %v31
  %v89 = vunpack.c.l.b16 %v32
  %v90 = vunpack.c.l.b16 %v33
  %v91 = vunpack.c.l.b16 %v34
  %v92 = vunpack.c.l.b16 %v35
  %v93 = vpack.c.b16 %v89, %v88
  %v94 = vpack.c.b16 %v91, %v90
  %v95 = vpack.c.b16 %v92, %v92
  %vm98 = vcmask 293888
  %v100 = vsel %vm98, %v75, 0
  %v103 = vsel %vm98, %v76, 0
  %v106 = vsel %vm98, %v77, 0
  %v109 = vsel %vm98, %v78, 0
  %v112 = vsel %vm98, %v79, 0
  %v115 = vsel %vm98, %v80, 0
  %v118 = vsel %vm98, %v81, 0
  %v121 = vsel %vm98, %v82, 0
  %vm123 = vcmask 1041408
  %v125 = vsel %vm123, %v95, 0
  %127 = vmatprep.subr.bf16.mxu0 0
  %128 = vmatpush1.bf16.msra.mxu0 0
  %129 = vmatprep.subr.bf16.mxu0 0
  %130 = vmatpush1.bf16.msra.mxu0 0
  %131 = vmatprep.subr.bf16.mxu0 0
  %132 = vmatpush1.bf16.msra.mxu0 0
  %133 = vmatprep.subr.bf16.mxu0 0
  %134 = vmatpush1.bf16.msra.mxu0 0
  %135 = vmatprep.subr.bf16.mxu0 0
  %136 = vmatpush1.bf16.msra.mxu0 0
  %137 = vmatprep.subr.bf16.mxu0 0
  %138 = vmatpush1.bf16.msra.mxu0 %v125
  %139 = vmatprep.subr.bf16.mxu0 0
  %140 = vmatpush1.bf16.msra.mxu0 %v94
  %141 = vmatprep.subr.bf16.mxu0 0
  %142 = vmatpush1.bf16.msra.mxu0 %v93
  %143 = vmatprep.subr.bf16.mxu0 0
  %144 = vmatpush2.bf16.msra.mxu0 0
  %145 = vmatprep.subr.bf16.mxu0 0
  %146 = vmatpush2.bf16.msra.mxu0 0
  %147 = vmatprep.subr.bf16.mxu0 0
  %148 = vmatpush2.bf16.msra.mxu0 0
  %149 = vmatprep.subr.bf16.mxu0 0
  %150 = vmatpush2.bf16.msra.mxu0 0
  %151 = vmatprep.subr.bf16.mxu0 0
  %152 = vmatpush2.bf16.msra.mxu0 0
  %153 = vmatprep.subr.bf16.mxu0 0
  %154 = vmatpush2.bf16.msra.mxu0 0
  %155 = vmatprep.subr.bf16.mxu0 0
  %156 = vmatpush2.bf16.msra.mxu0 0
  %157 = vmatprep.subr.bf16.mxu0 0
  %158 = vmatpush2.bf16.msra.mxu0 0
  %159 = vmatprep.mubr.bf16.mxu0 0
  %160 = vmatmul.mubr.bf16.gmra.mxu0 %v100
  %v161 = vpop.f32.mrf.mxu0
  %v162 = vadd.f32 %v41, %v161
  %v163 = vpop.f32.mrf.mxu0
  %v164 = vpop.f32.mrf.mxu0
  %v165 = vadd.f32 %v41, %v164
  %v166 = vpop.f32.mrf.mxu0
  %167 = vmatprep.mubr.bf16.mxu0 0
  %168 = vmatmul.mubr.bf16.gmra.mxu0 %v103
  %v169 = vpop.f32.mrf.mxu0
  %v170 = vadd.f32 %v41, %v169
  %v171 = vpop.f32.mrf.mxu0
  %v172 = vpop.f32.mrf.mxu0
  %v173 = vadd.f32 %v41, %v172
  %v174 = vpop.f32.mrf.mxu0
  %175 = vmatprep.mubr.bf16.mxu0 0
  %176 = vmatmul.mubr.bf16.gmra.mxu0 %v106
  %v177 = vpop.f32.mrf.mxu0
  %v178 = vadd.f32 %v41, %v177
  %v179 = vpop.f32.mrf.mxu0
  %v180 = vpop.f32.mrf.mxu0
  %v181 = vadd.f32 %v41, %v180
  %v182 = vpop.f32.mrf.mxu0
  %183 = vmatprep.mubr.bf16.mxu0 0
  %184 = vmatmul.mubr.bf16.gmra.mxu0 %v109
  %v185 = vpop.f32.mrf.mxu0
  %v186 = vadd.f32 %v41, %v185
  %v187 = vpop.f32.mrf.mxu0
  %v188 = vpop.f32.mrf.mxu0
  %v189 = vadd.f32 %v41, %v188
  %v190 = vpop.f32.mrf.mxu0
  %191 = vmatprep.mubr.bf16.mxu0 0
  %192 = vmatmul.mubr.bf16.gmra.mxu0 %v112
  %v193 = vpop.f32.mrf.mxu0
  %v194 = vadd.f32 %v41, %v193
  %v195 = vpop.f32.mrf.mxu0
  %v196 = vpop.f32.mrf.mxu0
  %v197 = vadd.f32 %v41, %v196
  %v198 = vpop.f32.mrf.mxu0
  %199 = vmatprep.mubr.bf16.mxu0 0
  %200 = vmatmul.mubr.bf16.gmra.mxu0 %v115
  %v201 = vpop.f32.mrf.mxu0
  %v202 = vadd.f32 %v41, %v201
  %v203 = vpop.f32.mrf.mxu0
  %v204 = vpop.f32.mrf.mxu0
  %v205 = vadd.f32 %v41, %v204
  %v206 = vpop.f32.mrf.mxu0
  %207 = vmatprep.mubr.bf16.mxu0 0
  %208 = vmatmul.mubr.bf16.gmra.mxu0 %v118
  %v209 = vpop.f32.mrf.mxu0
  %v210 = vadd.f32 %v41, %v209
  %v211 = vpop.f32.mrf.mxu0
  %v212 = vpop.f32.mrf.mxu0
  %v213 = vadd.f32 %v41, %v212
  %v214 = vpop.f32.mrf.mxu0
  %215 = vmatprep.mubr.bf16.mxu0 0
  %216 = vmatmul.mubr.bf16.gmra.mxu0 %v121
  %v217 = vpop.f32.mrf.mxu0
  %v218 = vadd.f32 %v41, %v217
  %v219 = vpop.f32.mrf.mxu0
  %v220 = vpop.f32.mrf.mxu0
  %v221 = vadd.f32 %v41, %v220
  %v222 = vpop.f32.mrf.mxu0
  %223 = vdwg.mxu0
  %vm224 = vcmask 261120
  %225 = vst.msk [vmem:[%s3] sm:$0xff] %vm224, %v162
  %226 = vst.msk [vmem:[%s3 + $0x8] sm:$0xff] %vm224, %v165
  %227 = vst.msk [vmem:[%s3 + $0x10] sm:$0xff] %vm224, %v170
  %228 = vst.msk [vmem:[%s3 + $0x18] sm:$0xff] %vm224, %v173
  %229 = vst.msk [vmem:[%s3 + $0x20] sm:$0xff] %vm224, %v178
  %230 = vst.msk [vmem:[%s3 + $0x28] sm:$0xff] %vm224, %v181
  %231 = vst.msk [vmem:[%s3 + $0x30] sm:$0xff] %vm224, %v186
  %232 = vst.msk [vmem:[%s3 + $0x38] sm:$0xff] %vm224, %v189
  %233 = vst.msk [vmem:[%s3 + $0x40] sm:$0xff] %vm224, %v194
  %234 = vst.msk [vmem:[%s3 + $0x48] sm:$0xff] %vm224, %v197
  %235 = vst.msk [vmem:[%s3 + $0x50] sm:$0xff] %vm224, %v202
  %236 = vst.msk [vmem:[%s3 + $0x58] sm:$0xff] %vm224, %v205
  %237 = vst.msk [vmem:[%s3 + $0x60] sm:$0xff] %vm224, %v210
  %238 = vst.msk [vmem:[%s3 + $0x68] sm:$0xff] %vm224, %v213
  %239 = vst.msk [vmem:[%s3 + $0x70] sm:$0xff] %vm224, %v218
  %240 = vst.msk [vmem:[%s3 + $0x78] sm:$0xff] %vm224, %v221
  // Predicated region
  $region14: #{_overlap_patch_embed_2d.1} parent=0 // pred_check
    _
  $region15: #{_overlap_patch_embed_2d.1} parent=0 // pred_check_branch
    %242 = sbr.rel (0) target = $region17
  $region16: #{_overlap_patch_embed_2d.1} parent=0 // pred_region
    _
  $region17: #{_overlap_patch_embed_2d.1} parent=0 // pred_fallthru
    _
  // Predicated region
  $region18: #{_overlap_patch_embed_2d.1} parent=0 // pred_check
    _
  $region19: #{_overlap_patch_embed_2d.1} parent=0 // pred_check_branch
    %244 = sbr.rel (0) target = $region21
  $region20: #{_overlap_patch_embed_2d.1} parent=0 // pred_region
    _
  $region21: #{_overlap_patch_embed_2d.1} parent=0 // pred_fallthru
    _

</llo_original>
